<compile_context>
chip_gen: v7x
topology: tpu7x:2x2x1
jax: 0.10.0
libtpu: 0.0.40
codegen_flags: <defaults>
</compile_context>

<pallas_src>
import jax
import jax.numpy as jnp
from jax.experimental import pallas as pl
from jax.experimental.pallas import tpu as pltpu


def _round_up(a, b):
    return (a + b - 1) // b * b


def _make_fused_tokenizer_kernel(compute_dtype):
    """One tile of packed rows: a single GEMM + bias.

    x_ref : (TR, pack*D_eff)      packed input rows
    w_ref : (pack*D_eff, pack*E)  block-diagonal fused weight (resident)
    b_ref : (1, pack*E)           fused bias (f32), tiled over pack groups
    o_ref : (TR, pack*E)          packed output rows
    """
    use_highest = jnp.dtype(compute_dtype) == jnp.dtype(jnp.float32)

    def kernel(x_ref, w_ref, b_ref, o_ref):
        xa = x_ref[...].astype(compute_dtype)
        acc = jnp.dot(
            xa, w_ref[...],
            preferred_element_type=jnp.float32,
            precision=jax.lax.Precision.HIGHEST if use_highest else None)
        o_ref[...] = (acc + b_ref[...]).astype(o_ref.dtype)

    return kernel


def ts_tokenizer_forward(x, conv_w, conv_b, fc_w, fc_b, *, kernel_size,
                         tile_rows=4096,
                         vmem_budget_bytes=24 * 1024 * 1024,
                         compute_dtype=jnp.bfloat16,
                         out_dtype=None):
    """x: (B, P, D).  Returns (B, P, embed_dim), matching TS_Tokenizer.forward."""
    B, P, D = x.shape
    K = kernel_size
    assert D >= K, "dim_in must be >= kernel_size (Conv1d needs L >= 1)"
    L = (D - K) // K + 1            # conv_output_length
    E = conv_w.shape[0]             # embed_dim
    N = B * P
    D_eff = L * K                   # conv (stride=K, pad=0) ignores any tail of x
    out_dtype = x.dtype if out_dtype is None else out_dtype

    # --- algebraic fusion of conv + flatten + fc into one (D_eff, E) GEMM ----
    wc = conv_w[:, 0, :].astype(jnp.float32)                 # (E, K)
    wfc3 = fc_w.reshape(E, E, L).astype(jnp.float32)         # [j, e, l]
    w_fused = jnp.einsum("ek,jel->lkj", wc, wfc3,
                         precision="highest").reshape(D_eff, E)
    b_fused = (jnp.einsum("e,jel->j", conv_b.astype(jnp.float32), wfc3,
                          precision="highest")
               + fc_b.astype(jnp.float32)).reshape(1, E)

    # --- lane-dense row packing ----------------------------------------------
    # Group `pack` consecutive rows so loads AND stores use >=128 lanes; the
    # weight becomes block-diagonal so the packed GEMM is exactly `pack`
    # independent copies of the original GEMM.
    compute_itemsize = jnp.dtype(compute_dtype).itemsize
    if D_eff % 128 == 0 and E % 128 == 0:
        pack = 1
    else:
        pack = max(-(-128 // D_eff), -(-128 // E))
        # keep the double-buffered block-diagonal weight small in VMEM
        while pack > 1 and 2 * (pack * D_eff) * (pack * E) * compute_itemsize > (2 << 20):
            pack -= 1

    # Row view of x.  Copies only happen when they are unavoidable:
    #   - D_eff != D  -> slice off the conv-ignored tail
    #   - N % pack!=0 -> pad at most pack-1 rows
    x2 = x.reshape(N, D)
    if D_eff != D:
        x2 = x2[:, :D_eff]
    n_rows = _round_up(N, pack)
    if n_rows != N:
        x2 = jnp.pad(x2, ((0, n_rows - N), (0, 0)))
    n_pack = n_rows // pack
    x_packed = x2.reshape(n_pack, pack * D_eff)               # free reshape

    w_bd = jnp.kron(jnp.eye(pack, dtype=jnp.float32),
                    w_fused).astype(compute_dtype)            # (pack*D, pack*E)
    b_bd = jnp.tile(b_fused, (1, pack)).astype(jnp.float32)   # (1, pack*E)

    # --- tile sizing (double-buffered in/out tiles + weight/bias) ------------
    in_itemsize = jnp.dtype(x.dtype).itemsize
    out_itemsize = jnp.dtype(out_dtype).itemsize
    w_bytes = (pack * D_eff) * (pack * E) * compute_itemsize
    b_bytes = (pack * E) * 4
    row_bytes = pack * D_eff * in_itemsize + pack * E * out_itemsize
    budget = max(vmem_budget_bytes - 2 * (w_bytes + b_bytes), 1 << 20)
    max_rows = max(8, (budget // (2 * row_bytes)) // 8 * 8)
    tr = max(8, (min(tile_rows, max_rows) // 8) * 8)
    if tr >= n_pack:
        if n_pack >= 16:
            # split into 2 balanced tiles so both v7x TensorCores get work
            tr = _round_up(-(-n_pack // 2), 8)
        else:
            tr = n_pack            # single block equal to full array dim
    grid = -(-n_pack // tr)        # Pallas handles a ragged final tile

    vmem_limit = 2 * (tr * row_bytes + w_bytes + b_bytes) + (1 << 20)
    vmem_limit = int(min(max(vmem_limit, 4 << 20), 48 << 20))

    cost = pl.CostEstimate(
        flops=2 * grid * tr * (pack * D_eff) * (pack * E),
        transcendentals=0,
        bytes_accessed=n_pack * row_bytes + w_bytes + b_bytes,
    )

    out = pl.pallas_call(
        _make_fused_tokenizer_kernel(compute_dtype),
        out_shape=jax.ShapeDtypeStruct((n_pack, pack * E), out_dtype),
        grid_spec=pltpu.PrefetchScalarGridSpec(
            num_scalar_prefetch=0,
            grid=(grid,),
            in_specs=[
                pl.BlockSpec((tr, pack * D_eff), lambda i: (i, 0)),        # x rows
                pl.BlockSpec((pack * D_eff, pack * E), lambda i: (0, 0)),  # weight
                pl.BlockSpec((1, pack * E), lambda i: (0, 0)),             # bias
            ],
            out_specs=pl.BlockSpec((tr, pack * E), lambda i: (i, 0)),
        ),
        compiler_params=pltpu.CompilerParams(
            dimension_semantics=("parallel",),
            vmem_limit_bytes=vmem_limit),
        cost_estimate=cost,
    )(x_packed, w_bd, b_bd)

    y = out.reshape(n_rows, E)
    if n_rows != N:
        y = y[:N]
    return y.reshape(B, P, E)


if __name__ == "__main__":
    # Small shapes consistent with the module: dim_in=16, kernel_size=4, embed_dim=32
    B, P, D = 2, 8, 16
    K = 4
    E = 32
    L = (D - K) // K + 1

    key = jax.random.PRNGKey(0)
    k1, k2, k3, k4, k5 = jax.random.split(key, 5)
    x = jax.random.normal(k1, (B, P, D), jnp.float32)
    conv_w = jax.random.normal(k2, (E, 1, K), jnp.float32) * 0.10   # Conv1d weight
    conv_b = jax.random.normal(k3, (E,), jnp.float32) * 0.10        # Conv1d bias
    fc_w = jax.random.normal(k4, (E, E * L), jnp.float32) * 0.05    # Linear weight
    fc_b = jax.random.normal(k5, (E,), jnp.float32) * 0.10          # Linear bias

    out = ts_tokenizer_forward(x, conv_w, conv_b, fc_w, fc_b, kernel_size=K)
    out = jax.block_until_ready(out)
    assert out.shape == (B, P, E)

    # Pure-JAX reference reproducing the torch forward semantics exactly (f32).
    xn = x.reshape(B * P, D)
    patches = xn.reshape(B * P, L, K)                                  # stride==K conv windows
    conv = jnp.einsum("nlk,ek->nel", patches, conv_w[:, 0, :],
                      precision="highest") + conv_b[None, :, None]     # (N, E, L) == NCL
    flat = conv.reshape(B * P, E * L)                                  # torch .view(N, -1)
    ref = jnp.dot(flat, fc_w.T, precision="highest") + fc_b
    ref = ref.reshape(B, P, E)

    # bf16 MXU operands with f32 accumulation -> ~1e-2-relative numerics.
    assert jnp.allclose(out, ref, atol=2e-2, rtol=2e-2), "mismatch vs reference"
    print("KERNEL_OK")
</pallas_src>

<mosaic_0001>
module attributes {stable_mosaic.version = 11 : i64} {
  func.func @kernel(%arg0: i32, %arg1: memref<2x128xf32, #tpu.memory_space<vmem>>, %arg2: memref<128x256xbf16, #tpu.memory_space<vmem>>, %arg3: memref<1x256xf32, #tpu.memory_space<vmem>>, %arg4: memref<2x256xf32, #tpu.memory_space<vmem>>) attributes {dimension_semantics = [#tpu.dimension_semantics<parallel>], iteration_bounds = array<i64: 1>, scalar_prefetch = 0 : i64, scratch_operands = 0 : i64, tpu.core_type = #tpu.core_type<tc>, window_params = [{transform_indices = @transform_0, window_bounds = array<i64: 2, 128>}, {pipeline_mode = #tpu.pipeline_mode<synchronous>, transform_indices = @transform_1, window_bounds = array<i64: 128, 256>}, {pipeline_mode = #tpu.pipeline_mode<synchronous>, transform_indices = @transform_2, window_bounds = array<i64: 1, 256>}, {transform_indices = @transform_3, window_bounds = array<i64: 2, 256>}]} {
    %c0 = arith.constant 0 : index
    %c0_0 = arith.constant 0 : index
    %0 = vector.load %arg1[%c0, %c0_0] : memref<2x128xf32, #tpu.memory_space<vmem>>, vector<2x128xf32>
    %1 = arith.truncf %0 : vector<2x128xf32> to vector<2x128xbf16>
    %c0_1 = arith.constant 0 : index
    %c0_2 = arith.constant 0 : index
    %2 = vector.load %arg2[%c0_1, %c0_2] : memref<128x256xbf16, #tpu.memory_space<vmem>>, vector<128x256xbf16>
    %cst = arith.constant dense<0.000000e+00> : vector<2x256xf32>
    %3 = tpu.matmul %1, %2, %cst {dimension_numbers = #tpu.dot_dimension_numbers<[1], [0], [0], [1], [0, 0, 1, 1], [], []>} : vector<2x128xbf16>, vector<128x256xbf16>, vector<2x256xf32> -> vector<2x256xf32>
    %c0_3 = arith.constant 0 : index
    %c0_4 = arith.constant 0 : index
    %4 = vector.load %arg3[%c0_3, %c0_4] : memref<1x256xf32, #tpu.memory_space<vmem>>, vector<1x256xf32>
    %5 = vector.broadcast %4 : vector<1x256xf32> to vector<2x256xf32>
    %6 = arith.addf %3, %5 : vector<2x256xf32>
    %c0_5 = arith.constant 0 : index
    %c0_6 = arith.constant 0 : index
    %7 = vector.load %arg4[%c0_5, %c0_6] : memref<2x256xf32, #tpu.memory_space<vmem>>, vector<2x256xf32>
    tpu.vector_store %arg4[%c0_5, %c0_6], %6 {strides = array<i32>} : memref<2x256xf32, #tpu.memory_space<vmem>>, vector<2x256xf32>,
    return
  }
  func.func @transform_0(%arg0: i32) -> (i32, i32) {
    %c0_i32 = arith.constant 0 : i32
    %c0_i32_0 = arith.constant 0 : i32
    return %arg0, %c0_i32 : i32, i32
  }
  func.func @transform_1(%arg0: i32) -> (i32, i32) {
    %c0_i32 = arith.constant 0 : i32
    %c0_i32_0 = arith.constant 0 : i32
    %c0_i32_1 = arith.constant 0 : i32
    return %c0_i32, %c0_i32_0 : i32, i32
  }
  func.func @transform_2(%arg0: i32) -> (i32, i32) {
    %c0_i32 = arith.constant 0 : i32
    %c0_i32_0 = arith.constant 0 : i32
    %c0_i32_1 = arith.constant 0 : i32
    return %c0_i32, %c0_i32_0 : i32, i32
  }
  func.func @transform_3(%arg0: i32) -> (i32, i32) {
    %c0_i32 = arith.constant 0 : i32
    %c0_i32_0 = arith.constant 0 : i32
    return %arg0, %c0_i32 : i32, i32
  }
}

</mosaic_0001>

<llo_original>
// kernel: tpu_custom_call.1
$region0: #{tpu_custom_call.1}
  #allocation0 [shape = 'u32[]', space=smem, size = 0x4, offset = 0x4, fixed_abs, tag = 'smem constant byte address 0x4 - core index']
  #allocation1 [shape = 'u32[144,128]{1,0:T(1,128)}', space=vmem, size = 0x12000, scoped, tag = 'internal scratch']
  %s0 = inlined_call_operand.hbm [shape: f32[2,128], index: 0, kind: input, shape index: {}]
  %s1 = inlined_call_operand.hbm [shape: bf16[128,256], index: 1, kind: input, shape index: {}]
  %s2 = inlined_call_operand.vmem [shape: f32[1,256], index: 2, kind: input, shape index: {}]
  %s3 = inlined_call_operand.hbm [shape: f32[2,256], index: 3, kind: output, shape index: {}]
  %s4 = sld [smem:[#allocation0]]
  $region30: #{tpu_custom_call.1} parent=0
    _
  %s6 = ssub.s32 1, %s4
  %s7 = scalar_select 0, %s6, %s4
  $region1: #{tpu_custom_call.1} parent=0
    #allocation2 [shape = 'u8[1024]{0}', space=vmem, size = 0x400, scoped, tag = 'input window, operand 0, single buffered']
    #allocation3 [shape = 's32[1]{0}', space=sflag, size = 0x4, scoped, tag = 'scoped memory for tpu_custom_call.1']
    #allocation4 [shape = 's32[1]{0}', space=sflag, size = 0x4, scoped, tag = 'scoped memory for tpu_custom_call.1']
    #allocation5 [shape = 'u8[65536]{0}', space=vmem, size = 0x10000, scoped, tag = 'input window, operand 1, single buffered']
    #allocation6 [shape = 's32[1]{0}', space=sflag, size = 0x4, scoped, tag = 'scoped memory for tpu_custom_call.1']
    #allocation7 [shape = 'u8[2048]{0}', space=vmem, size = 0x800, scoped, tag = 'output window, operand 0, single buffered']
    %8 = vsyncpa [#allocation3], 0
    %9 = vsyncpa [#allocation6], 0
    %10 = vsyncpa [#allocation4], 0
    // Predicated region
    $region2: #{tpu_custom_call.1} parent=1 // pred_check
      _
    $region3: #{tpu_custom_call.1} parent=1 // pred_check_branch
      %12 = sbr.rel (0) target = $region5
    $region4: #{tpu_custom_call.1} parent=1 // pred_region
      %s14 = ssub.s32 32, 32
      %15 = vsyncadd [#allocation3], %s14
      %s17 = sshll.u32 [#allocation2], 4
      %s18 = int_to_ptr.vmem [resolvable:$true] %s17
      %20 = dma.hbm_to_vmem [thread:$0]  %s0, 32, %s18, [#allocation3]
    $region5: #{tpu_custom_call.1} parent=1 // pred_fallthru
      _
    // Predicated region
    $region6: #{tpu_custom_call.1} parent=1 // pred_check
      _
    $region7: #{tpu_custom_call.1} parent=1 // pred_check_branch
      %22 = sbr.rel (0) target = $region9
    $region8: #{tpu_custom_call.1} parent=1 // pred_region
      %s24 = ssub.s32 2048, 2048
      %25 = vsyncadd [#allocation6], %s24
      %s26 = sshll.u32 [#allocation5], 4
      %s27 = int_to_ptr.vmem [resolvable:$true] %s26
      %32 = dma.hbm_to_vmem [thread:$0]  %s1, 2048, %s27, [#allocation6], 128, 128, 8
    $region9: #{tpu_custom_call.1} parent=1 // pred_fallthru
      _
    // Predicated region
    $region10: #{tpu_custom_call.1} parent=1 // pred_check
      _
    $region11: #{tpu_custom_call.1} parent=1 // pred_check_branch
      %34 = sbr.rel (0) target = $region13
    $region12: #{tpu_custom_call.1} parent=1 // pred_region
      _
    $region13: #{tpu_custom_call.1} parent=1 // pred_fallthru
      _
    // Predicated region
    $region14: #{tpu_custom_call.1} parent=1 // pred_check
      _
    $region15: #{tpu_custom_call.1} parent=1 // pred_check_branch
      %36 = sbr.rel (0) target = $region17
    $region16: #{tpu_custom_call.1} parent=1 // pred_region
      %37 = dma.done [#allocation3], 32
    $region17: #{tpu_custom_call.1} parent=1 // pred_fallthru
      _
    // Predicated region
    $region18: #{tpu_custom_call.1} parent=1 // pred_check
      _
    $region19: #{tpu_custom_call.1} parent=1 // pred_check_branch
      %39 = sbr.rel (0) target = $region21
    $region20: #{tpu_custom_call.1} parent=1 // pred_region
      %40 = dma.done [#allocation6], 2048
    $region21: #{tpu_custom_call.1} parent=1 // pred_fallthru
      _
    %v42 = vld [vmem:[#allocation2] sm:$0x3]
    %v43 = vpack.c.bf16 %v42, %v42
    %v44 = vld [vmem:[#allocation5] sm:$0xff]
    %v45 = vld [vmem:[#allocation5 + $0x8] sm:$0xff]
    %v46 = vld [vmem:[#allocation5 + $0x10] sm:$0xff]
    %v47 = vld [vmem:[#allocation5 + $0x18] sm:$0xff]
    %v48 = vld [vmem:[#allocation5 + $0x20] sm:$0xff]
    %v49 = vld [vmem:[#allocation5 + $0x28] sm:$0xff]
    %v50 = vld [vmem:[#allocation5 + $0x30] sm:$0xff]
    %v51 = vld [vmem:[#allocation5 + $0x38] sm:$0xff]
    %v52 = vld [vmem:[#allocation5 + $0x40] sm:$0xff]
    %v53 = vld [vmem:[#allocation5 + $0x48] sm:$0xff]
    %v54 = vld [vmem:[#allocation5 + $0x50] sm:$0xff]
    %v55 = vld [vmem:[#allocation5 + $0x58] sm:$0xff]
    %v56 = vld [vmem:[#allocation5 + $0x60] sm:$0xff]
    %v57 = vld [vmem:[#allocation5 + $0x68] sm:$0xff]
    %v58 = vld [vmem:[#allocation5 + $0x70] sm:$0xff]
    %v59 = vld [vmem:[#allocation5 + $0x78] sm:$0xff]
    %v60 = vld [vmem:[%s2] sm:$0x3]
    %v62 = vlaneseq
    %v63 = vshrl.u32 %v62, 7
    %v64 = vsub.s32 0, %v63
    %v65 = vrot.slane %v60, %v64
    %v66 = vlaneseq
    %v67 = vshrl.u32 %v66, 7
    %v68 = vsub.s32 1, %v67
    %v69 = vrot.slane %v60, %v68
    %v88 = vunpack.c.l.b16 %v44
    %v89 = vunpack.c.h.b16 %v44
    %v90 = vunpack.c.l.b16 %v45
    %v91 = vunpack.c.h.b16 %v45
    %v92 = vunpack.c.l.b16 %v46
    %v93 = vunpack.c.h.b16 %v46
    %v94 = vunpack.c.l.b16 %v47
    %v95 = vunpack.c.h.b16 %v47
    %v96 = vunpack.c.l.b16 %v48
    %v97 = vunpack.c.h.b16 %v48
    %v98 = vunpack.c.l.b16 %v49
    %v99 = vunpack.c.h.b16 %v49
    %v100 = vunpack.c.l.b16 %v50
    %v101 = vunpack.c.h.b16 %v50
    %v102 = vunpack.c.l.b16 %v51
    %v103 = vunpack.c.h.b16 %v51
    %v104 = vunpack.c.l.b16 %v52
    %v105 = vunpack.c.h.b16 %v52
    %v106 = vunpack.c.l.b16 %v53
    %v107 = vunpack.c.h.b16 %v53
    %v108 = vunpack.c.l.b16 %v54
    %v109 = vunpack.c.h.b16 %v54
    %v110 = vunpack.c.l.b16 %v55
    %v111 = vunpack.c.h.b16 %v55
    %v112 = vunpack.c.l.b16 %v56
    %v113 = vunpack.c.h.b16 %v56
    %v114 = vunpack.c.l.b16 %v57
    %v115 = vunpack.c.h.b16 %v57
    %v116 = vunpack.c.l.b16 %v58
    %v117 = vunpack.c.h.b16 %v58
    %v118 = vunpack.c.l.b16 %v59
    %v119 = vunpack.c.h.b16 %v59
    %v120 = vpack.c.b16 %v90, %v88
    %v121 = vpack.c.b16 %v91, %v89
    %v122 = vpack.c.b16 %v94, %v92
    %v123 = vpack.c.b16 %v95, %v93
    %v124 = vpack.c.b16 %v98, %v96
    %v125 = vpack.c.b16 %v99, %v97
    %v126 = vpack.c.b16 %v102, %v100
    %v127 = vpack.c.b16 %v103, %v101
    %v128 = vpack.c.b16 %v106, %v104
    %v129 = vpack.c.b16 %v107, %v105
    %v130 = vpack.c.b16 %v110, %v108
    %v131 = vpack.c.b16 %v111, %v109
    %v132 = vpack.c.b16 %v114, %v112
    %v133 = vpack.c.b16 %v115, %v113
    %v134 = vpack.c.b16 %v118, %v116
    %v135 = vpack.c.b16 %v119, %v117
    %152 = vmatprep.subr.bf16.mxu0 %v121
    %153 = vmatpush1.bf16.msra.mxu0 %v120
    %154 = vmatprep.subr.bf16.mxu0 %v123
    %155 = vmatpush1.bf16.msra.mxu0 %v122
    %156 = vmatprep.subr.bf16.mxu0 %v125
    %157 = vmatpush1.bf16.msra.mxu0 %v124
    %158 = vmatprep.subr.bf16.mxu0 %v127
    %159 = vmatpush1.bf16.msra.mxu0 %v126
    %160 = vmatprep.subr.bf16.mxu0 %v129
    %161 = vmatpush1.bf16.msra.mxu0 %v128
    %162 = vmatprep.subr.bf16.mxu0 %v131
    %163 = vmatpush1.bf16.msra.mxu0 %v130
    %164 = vmatprep.subr.bf16.mxu0 %v133
    %165 = vmatpush1.bf16.msra.mxu0 %v132
    %166 = vmatprep.subr.bf16.mxu0 %v135
    %167 = vmatpush1.bf16.msra.mxu0 %v134
    %168 = vmatprep.subr.bf16.mxu0 0
    %169 = vmatpush1.bf16.msra.mxu0 0
    %170 = vmatprep.subr.bf16.mxu0 0
    %171 = vmatpush1.bf16.msra.mxu0 0
    %172 = vmatprep.subr.bf16.mxu0 0
    %173 = vmatpush1.bf16.msra.mxu0 0
    %174 = vmatprep.subr.bf16.mxu0 0
    %175 = vmatpush1.bf16.msra.mxu0 0
    %176 = vmatprep.subr.bf16.mxu0 0
    %177 = vmatpush1.bf16.msra.mxu0 0
    %178 = vmatprep.subr.bf16.mxu0 0
    %179 = vmatpush1.bf16.msra.mxu0 0
    %180 = vmatprep.subr.bf16.mxu0 0
    %181 = vmatpush1.bf16.msra.mxu0 0
    %182 = vmatprep.subr.bf16.mxu0 0
    %183 = vmatpush1.bf16.msra.mxu0 0
    %184 = vmatprep.mubr.bf16.mxu0 0
    %185 = vmatmul.mubr.bf16.gmra.mrb[0].mxu0 %v43
    %v186 = vpop.f32.mrb[0].mxu0
    %v187 = vadd.f32 %v65, %v186
    %v188 = vpop.f32.mrb[0].mxu0
    %v189 = vadd.f32 %v69, %v188
    %v190 = vpop.f32.mrb[0].mxu0
    %v191 = vpop.f32.mrb[0].mxu0
    %192 = vdwg.mxu0
    %v195 = vcombine.low %v187, %v189
    %v197 = vunpack.c.l.s4 1983009808
    %v198 = vunpack.c.0.s8 %v197
    %v199 = vlaneseq
    %v200 = vshrl.u32 %v199, 7
    %v201 = vsub.s32 %v198, %v200
    %v202 = vrot.slane %v195, %v201
    %204 = vst [vmem:[#allocation7] sm:$0xf] %v202
    // Predicated region
    $region22: #{tpu_custom_call.1} parent=1 // pred_check
      _
    $region23: #{tpu_custom_call.1} parent=1 // pred_check_branch
      %206 = sbr.rel (0) target = $region25
    $region24: #{tpu_custom_call.1} parent=1 // pred_region
      %s208 = ssub.s32 64, 64
      %209 = vsyncadd [#allocation4], %s208
      %s211 = sshll.u32 [#allocation7], 4
      %s212 = int_to_ptr.vmem [resolvable:$true] %s211
      %214 = dma.vmem_to_hbm [thread:$0]  %s212, 64, %s3, [#allocation4]
    $region25: #{tpu_custom_call.1} parent=1 // pred_fallthru
      _
    // Predicated region
    $region26: #{tpu_custom_call.1} parent=1 // pred_check
      _
    $region27: #{tpu_custom_call.1} parent=1 // pred_check_branch
      %216 = sbr.rel (0) target = $region29
    $region28: #{tpu_custom_call.1} parent=1 // pred_region
      %217 = dma.done [#allocation4], 64
    $region29: #{tpu_custom_call.1} parent=1 // pred_fallthru
      _
    %218 = vsyncpa [#allocation3], 1
    %219 = vsyncpa [#allocation6], 1
    %220 = vsyncpa [#allocation4], 1

</llo_original>
